<compile_context>
chip_gen: v7x
topology: tpu7x:2x2x1
jax: 0.10.0
libtpu: 0.0.40
codegen_flags: <defaults>
</compile_context>

<pallas_src>
import functools

import numpy as np
import jax
import jax.numpy as jnp
from jax.experimental import pallas as pl
from jax.experimental.pallas import tpu as pltpu


def _round_up(x, m):
    return (x + m - 1) // m * m


# ------------------------------ Pallas kernel -------------------------------

def _dense_layer_kernel(x_ref, s1_ref, b1_ref, w1t_ref, b2_ref, w2k_ref,
                        mask_ref, o_ref, patch_ref, *, W):
    """Fused BN1+ReLU+Conv1x1(+BN2 folded)+ReLU+Conv3x3 for one pixel block.

    Channels on sublanes, batch-folded pixels on lanes (M = imgs/block * H*W):
      x_ref    : (Cin,    M)        f32
      s1_ref   : (Cin,    1)        f32   folded BN1 scale
      b1_ref   : (Cin,    1)        f32   folded BN1 bias
      w1t_ref  : (mid_p,  Cin)      bf16  conv1 weight^T, BN2 scale folded in
      b2_ref   : (mid_p,  1)        f32   BN2 bias (zero-padded rows)
      w2k_ref  : (Cout_p, 9*mid_p)  bf16  conv2 weight, tap-major
      mask_ref : (9,      M)        f32   per-tap SAME-padding / image-edge mask
      o_ref    : (Cout_p, M)        f32
      patch_ref: (9*mid_p, M)       bf16  im2row scratch (fully rewritten)
    """
    mid_p = w1t_ref.shape[0]
    M = x_ref.shape[-1]

    # ---- norm1 + relu1 (f32 VPU) ------------------------------------------
    a1 = jnp.maximum(x_ref[...] * s1_ref[...] + b1_ref[...], 0.0)      # (Cin, M)

    # ---- conv1 (1x1, BN2 scale folded) on the MXU in bf16 ------------------
    bt = jnp.dot(w1t_ref[...], a1.astype(jnp.bfloat16),
                 preferred_element_type=jnp.float32)                   # (mid_p, M)
    a2 = jnp.maximum(bt + b2_ref[...], 0.0)                            # (mid_p, M) f32

    # ---- im2row: 9 XLU rotations + mask multiply, tap-major on sublanes ----
    for t in range(9):                        # static unroll (9 taps)
        oy = t // 3 - 1
        ox = t % 3 - 1
        delta = oy * W + ox                   # flat-pixel offset of this tap
        rolled = a2 if delta == 0 else pltpu.roll(a2, shift=(-delta) % M, axis=1)
        # mask kills SAME-padding taps, cross-row wraparound AND cross-image
        # reads (the batch is folded into the pixel axis), so the rotate's
        # wraparound elements are always zeroed.
        patch_ref[pl.ds(t * mid_p, mid_p), :] = (
            rolled * mask_ref[t:t + 1, :]).astype(jnp.bfloat16)

    # ---- conv2 (3x3) as one lane-dense bf16 MXU matmul ----------------------
    o_ref[...] = jnp.dot(w2k_ref[...], patch_ref[...],
                         preferred_element_type=jnp.float32)


# --------------------------------- wrapper ----------------------------------

def dense_layer_forward(inputs, kp, imgs_per_block=None):
    """_DenseLayer.forward.  `inputs` is an NCHW array or a list of them
    (concatenated along channels, like torch.cat(inputs, 1)).  Returns the
    new features (N, growth_rate, H, W) in NCHW."""
    if isinstance(inputs, (list, tuple)):
        x = inputs[0] if len(inputs) == 1 else jnp.concatenate(inputs, axis=1)
    else:
        x = inputs
    N, Cin, H, W = x.shape
    HW = H * W
    if imgs_per_block is None:
        imgs_per_block = N                     # one fat matmul per weight push
    assert N % imgs_per_block == 0
    B_M = imgs_per_block * HW
    # TODO(synk): zero-pad the pixel axis when H*W*imgs_per_block is not a
    # multiple of 128 (e.g. 28x28, 56x56 feature maps).
    assert B_M % 128 == 0, "pixel block must be lane-dense (multiple of 128)"
    M_total = N * HW
    n_blocks = N // imgs_per_block

    mid_p = kp['w1t'].shape[0]
    cout_p = kp['w2k'].shape[0]
    cout = kp['cout']

    # Fold the batch into the pixel/lane axis: (Cin, N*H*W).
    x2 = jnp.transpose(x, (1, 0, 2, 3)).reshape(Cin, M_total)

    # Per-tap validity masks, precomputed once on the host (no //, % in-kernel).
    pix = np.arange(B_M)
    hh = (pix // W) % H                        # row within its image
    ww = pix % W                               # col within its image
    masks = np.empty((9, B_M), np.float32)
    for t in range(9):
        oy, ox = t // 3 - 1, t % 3 - 1
        masks[t] = ((hh + oy >= 0) & (hh + oy < H) &
                    (ww + ox >= 0) & (ww + ox < W)).astype(np.float32)
    masks = jnp.asarray(masks)

    kernel = functools.partial(_dense_layer_kernel, W=W)
    # NOTE: at realistic DenseNet sizes (mid=128, 56x56 maps) tile the pixel
    # axis (row groups with a 1-row halo, or 3 row-group matmuls of K=3*mid)
    # so the bf16 (9*mid_p, B_M) scratch + double-buffered inputs stay under
    # v7x's 64 MiB VMEM, and raise vmem_limit_bytes (v5e default scoped VMEM
    # is only 16 MiB) via pltpu.CompilerParams(vmem_limit_bytes=...).
    out = pl.pallas_call(
        kernel,
        out_shape=jax.ShapeDtypeStruct((cout_p, M_total), jnp.float32),
        grid=(n_blocks,),
        in_specs=[
            pl.BlockSpec((Cin, B_M), lambda g: (0, g)),           # x (pixel block)
            pl.BlockSpec((Cin, 1), lambda g: (0, 0)),             # scale1
            pl.BlockSpec((Cin, 1), lambda g: (0, 0)),             # bias1
            pl.BlockSpec((mid_p, Cin), lambda g: (0, 0)),         # w1^T (bf16)
            pl.BlockSpec((mid_p, 1), lambda g: (0, 0)),           # bias2
            pl.BlockSpec((cout_p, 9 * mid_p), lambda g: (0, 0)),  # w2 tap-major (bf16)
            pl.BlockSpec((9, B_M), lambda g: (0, 0)),             # tap masks
        ],
        out_specs=pl.BlockSpec((cout_p, B_M), lambda g: (0, g)),
        scratch_shapes=[pltpu.VMEM((9 * mid_p, B_M), jnp.bfloat16)],
        compiler_params=pltpu.CompilerParams(
            dimension_semantics=("parallel",)),    # v7x 2-TC sharding over blocks
    )(x2,
      kp['scale1'].reshape(Cin, 1), kp['bias1'].reshape(Cin, 1),
      kp['w1t'], kp['bias2'].reshape(mid_p, 1), kp['w2k'], masks)

    out = out.reshape(cout_p, N, H, W).transpose(1, 0, 2, 3)[:, :cout]
    return out


# ------------------------ parameters (deterministic) -------------------------

def init_dense_layer_params(key, num_input_features, growth_rate, bn_size,
                            eps=1e-5):
    """Raw eval-mode parameters (BN running stats folded to scale/bias)."""
    mid = bn_size * growth_rate
    ks = jax.random.split(key, 10)

    def bn_fold(kg, kb, km, kv, c):
        gamma = jax.random.uniform(kg, (c,), minval=0.5, maxval=1.5)
        beta = 0.1 * jax.random.normal(kb, (c,))
        mean = 0.1 * jax.random.normal(km, (c,))
        var = jax.random.uniform(kv, (c,), minval=0.5, maxval=1.5)
        scale = gamma / jnp.sqrt(var + eps)
        bias = beta - mean * scale
        return scale.astype(jnp.float32), bias.astype(jnp.float32)

    scale1, bias1 = bn_fold(ks[0], ks[1], ks[2], ks[3], num_input_features)
    w1 = (jax.random.normal(ks[4], (mid, num_input_features, 1, 1))
          / np.sqrt(num_input_features)).astype(jnp.float32)          # OIHW
    scale2, bias2 = bn_fold(ks[5], ks[6], ks[7], ks[8], mid)
    w2 = (jax.random.normal(ks[9], (growth_rate, mid, 3, 3))
          / np.sqrt(9.0 * mid)).astype(jnp.float32)                   # OIHW
    return dict(scale1=scale1, bias1=bias1, w1=w1,
                scale2=scale2, bias2=bias2, w2=w2)


def fold_kernel_params(raw):
    """Kernel-layout params: BN2 folded into conv1, bf16 weights, tap-major
    conv2 matrix, mid padded to the bf16 sublane tile (16) and Cout padded to
    the f32 sublane tile (8) so all stores are unmasked.  Padding is zeros,
    so the math is exact."""
    mid, cin = raw['w1'].shape[0], raw['w1'].shape[1]
    cout = raw['w2'].shape[0]
    mid_p = _round_up(mid, 16)
    cout_p = _round_up(cout, 8)

    w1t = raw['w1'][:, :, 0, 0] * raw['scale2'][:, None]              # exact BN2 fold
    w1t_p = jnp.zeros((mid_p, cin), jnp.float32).at[:mid].set(w1t)
    bias2_p = jnp.zeros((mid_p,), jnp.float32).at[:mid].set(raw['bias2'])

    # w2k[co, t*mid_p + ci] = w2[co, ci, ky, kx], t = ky*3 + kx  (tap-major)
    w2tap = jnp.transpose(raw['w2'], (0, 2, 3, 1))                    # (cout,3,3,mid)
    w2k_p = jnp.zeros((cout_p, 3, 3, mid_p), jnp.float32)
    w2k_p = w2k_p.at[:cout, :, :, :mid].set(w2tap).reshape(cout_p, 9 * mid_p)

    return dict(scale1=raw['scale1'], bias1=raw['bias1'],
                w1t=w1t_p.astype(jnp.bfloat16), bias2=bias2_p,
                w2k=w2k_p.astype(jnp.bfloat16),
                mid=mid, cout=cout)


# ------------------------- pure-JAX reference (check) ------------------------

def dense_layer_reference(inputs, raw):
    if isinstance(inputs, (list, tuple)):
        x = inputs[0] if len(inputs) == 1 else jnp.concatenate(inputs, axis=1)
    else:
        x = inputs
    a = jnp.maximum(x * raw['scale1'][None, :, None, None]
                    + raw['bias1'][None, :, None, None], 0.0)
    b = jax.lax.conv_general_dilated(
        a, raw['w1'], window_strides=(1, 1), padding='VALID',
        dimension_numbers=('NCHW', 'OIHW', 'NCHW'))
    b = jnp.maximum(b * raw['scale2'][None, :, None, None]
                    + raw['bias2'][None, :, None, None], 0.0)
    out = jax.lax.conv_general_dilated(
        b, raw['w2'], window_strides=(1, 1), padding=((1, 1), (1, 1)),
        dimension_numbers=('NCHW', 'OIHW', 'NCHW'))
    return out


# ----------------------------------- main ------------------------------------

if __name__ == "__main__":
    key = jax.random.PRNGKey(0)
    kx1, kx2, kp = jax.random.split(key, 3)

    # _DenseLayer(num_input_features=8, growth_rate=4, bn_size=2, drop_rate=0.0)
    # receiving a list of previous feature maps (DenseNet style): 4 + 4 channels.
    N, H, W = 2, 16, 16
    growth_rate, bn_size = 4, 2
    feats = [jax.random.normal(kx1, (N, 4, H, W), dtype=jnp.float32),
             jax.random.normal(kx2, (N, 4, H, W), dtype=jnp.float32)]
    num_input_features = 4 + 4

    raw = init_dense_layer_params(kp, num_input_features, growth_rate, bn_size)
    kparams = fold_kernel_params(raw)

    out = dense_layer_forward(feats, kparams)
    out = jax.block_until_ready(out)
    assert out.shape == (N, growth_rate, H, W), out.shape

    ref = jax.block_until_ready(dense_layer_reference(feats, raw))
    # Tolerance accounts for bf16 MXU operands (f32 accumulation kept).
    np.testing.assert_allclose(np.asarray(out), np.asarray(ref),
                               rtol=3e-2, atol=3e-2)

    print("KERNEL_OK")
</pallas_src>

<mosaic_0001>
module attributes {stable_mosaic.version = 11 : i64} {
  func.func @_dense_layer_kernel(%arg0: i32, %arg1: memref<8x512xf32, #tpu.memory_space<vmem>>, %arg2: memref<8x1xf32, #tpu.memory_space<vmem>>, %arg3: memref<8x1xf32, #tpu.memory_space<vmem>>, %arg4: memref<16x8xbf16, #tpu.memory_space<vmem>>, %arg5: memref<16x1xf32, #tpu.memory_space<vmem>>, %arg6: memref<8x144xbf16, #tpu.memory_space<vmem>>, %arg7: memref<9x512xf32, #tpu.memory_space<vmem>>, %arg8: memref<8x512xf32, #tpu.memory_space<vmem>>, %arg9: memref<144x512xbf16, #tpu.memory_space<vmem>>) attributes {dimension_semantics = [#tpu.dimension_semantics<parallel>], iteration_bounds = array<i64: 1>, scalar_prefetch = 0 : i64, scratch_operands = 1 : i64, tpu.core_type = #tpu.core_type<tc>, window_params = [{transform_indices = @transform_0, window_bounds = array<i64: 8, 512>}, {pipeline_mode = #tpu.pipeline_mode<synchronous>, transform_indices = @transform_1, window_bounds = array<i64: 8, 1>}, {pipeline_mode = #tpu.pipeline_mode<synchronous>, transform_indices = @transform_2, window_bounds = array<i64: 8, 1>}, {pipeline_mode = #tpu.pipeline_mode<synchronous>, transform_indices = @transform_3, window_bounds = array<i64: 16, 8>}, {pipeline_mode = #tpu.pipeline_mode<synchronous>, transform_indices = @transform_4, window_bounds = array<i64: 16, 1>}, {pipeline_mode = #tpu.pipeline_mode<synchronous>, transform_indices = @transform_5, window_bounds = array<i64: 8, 144>}, {pipeline_mode = #tpu.pipeline_mode<synchronous>, transform_indices = @transform_6, window_bounds = array<i64: 9, 512>}, {transform_indices = @transform_7, window_bounds = array<i64: 8, 512>}]} {
    %c0 = arith.constant 0 : index
    %c0_0 = arith.constant 0 : index
    %0 = vector.load %arg1[%c0, %c0_0] : memref<8x512xf32, #tpu.memory_space<vmem>>, vector<8x512xf32>
    %c0_1 = arith.constant 0 : index
    %c0_2 = arith.constant 0 : index
    %1 = vector.load %arg2[%c0_1, %c0_2] : memref<8x1xf32, #tpu.memory_space<vmem>>, vector<8x1xf32>
    %2 = vector.broadcast %1 : vector<8x1xf32> to vector<8x512xf32>
    %3 = arith.mulf %0, %2 : vector<8x512xf32>
    %c0_3 = arith.constant 0 : index
    %c0_4 = arith.constant 0 : index
    %4 = vector.load %arg3[%c0_3, %c0_4] : memref<8x1xf32, #tpu.memory_space<vmem>>, vector<8x1xf32>
    %5 = vector.broadcast %4 : vector<8x1xf32> to vector<8x512xf32>
    %6 = arith.addf %3, %5 : vector<8x512xf32>
    %cst = arith.constant 0.000000e+00 : f32
    %7 = vector.broadcast %cst : f32 to vector<8x512xf32>
    %8 = arith.maximumf %6, %7 : vector<8x512xf32>
    %c0_5 = arith.constant 0 : index
    %c0_6 = arith.constant 0 : index
    %9 = vector.load %arg4[%c0_5, %c0_6] : memref<16x8xbf16, #tpu.memory_space<vmem>>, vector<16x8xbf16>
    %10 = arith.truncf %8 : vector<8x512xf32> to vector<8x512xbf16>
    %cst_7 = arith.constant dense<0.000000e+00> : vector<16x512xf32>
    %11 = tpu.matmul %9, %10, %cst_7 {dimension_numbers = #tpu.dot_dimension_numbers<[1], [0], [0], [1], [0, 0, 1, 1], [], []>} : vector<16x8xbf16>, vector<8x512xbf16>, vector<16x512xf32> -> vector<16x512xf32>
    %c0_8 = arith.constant 0 : index
    %c0_9 = arith.constant 0 : index
    %12 = vector.load %arg5[%c0_8, %c0_9] : memref<16x1xf32, #tpu.memory_space<vmem>>, vector<16x1xf32>
    %13 = vector.broadcast %12 : vector<16x1xf32> to vector<16x512xf32>
    %14 = arith.addf %11, %13 : vector<16x512xf32>
    %cst_10 = arith.constant 0.000000e+00 : f32
    %15 = vector.broadcast %cst_10 : f32 to vector<16x512xf32>
    %16 = arith.maximumf %14, %15 : vector<16x512xf32>
    %c17_i32 = arith.constant 17 : i32
    %17 = tpu.dynamic_rotate %16 by %c17_i32 dim 1 : vector<16x512xf32>, i32 -> vector<16x512xf32>
    %c0_11 = arith.constant 0 : index
    %c0_12 = arith.constant 0 : index
    %18 = vector.load %arg7[%c0_11, %c0_12] : memref<9x512xf32, #tpu.memory_space<vmem>>, vector<1x512xf32>
    %19 = vector.broadcast %18 : vector<1x512xf32> to vector<16x512xf32>
    %20 = arith.mulf %17, %19 : vector<16x512xf32>
    %21 = arith.truncf %20 : vector<16x512xf32> to vector<16x512xbf16>
    %c0_13 = arith.constant 0 : index
    %c0_14 = arith.constant 0 : index
    %22 = vector.load %arg9[%c0_13, %c0_14] : memref<144x512xbf16, #tpu.memory_space<vmem>>, vector<16x512xbf16>
    tpu.vector_store %arg9[%c0_13, %c0_14], %21 {strides = array<i32>} : memref<144x512xbf16, #tpu.memory_space<vmem>>, vector<16x512xbf16>,
    %c16_i32 = arith.constant 16 : i32
    %23 = tpu.dynamic_rotate %16 by %c16_i32 dim 1 : vector<16x512xf32>, i32 -> vector<16x512xf32>
    %c1 = arith.constant 1 : index
    %c0_15 = arith.constant 0 : index
    %24 = vector.load %arg7[%c1, %c0_15] : memref<9x512xf32, #tpu.memory_space<vmem>>, vector<1x512xf32>
    %25 = vector.broadcast %24 : vector<1x512xf32> to vector<16x512xf32>
    %26 = arith.mulf %23, %25 : vector<16x512xf32>
    %27 = arith.truncf %26 : vector<16x512xf32> to vector<16x512xbf16>
    %c16 = arith.constant 16 : index
    %c0_16 = arith.constant 0 : index
    %28 = vector.load %arg9[%c16, %c0_16] : memref<144x512xbf16, #tpu.memory_space<vmem>>, vector<16x512xbf16>
    tpu.vector_store %arg9[%c16, %c0_16], %27 {strides = array<i32>} : memref<144x512xbf16, #tpu.memory_space<vmem>>, vector<16x512xbf16>,
    %c15_i32 = arith.constant 15 : i32
    %29 = tpu.dynamic_rotate %16 by %c15_i32 dim 1 : vector<16x512xf32>, i32 -> vector<16x512xf32>
    %c2 = arith.constant 2 : index
    %c0_17 = arith.constant 0 : index
    %30 = vector.load %arg7[%c2, %c0_17] : memref<9x512xf32, #tpu.memory_space<vmem>>, vector<1x512xf32>
    %31 = vector.broadcast %30 : vector<1x512xf32> to vector<16x512xf32>
    %32 = arith.mulf %29, %31 : vector<16x512xf32>
    %33 = arith.truncf %32 : vector<16x512xf32> to vector<16x512xbf16>
    %c32 = arith.constant 32 : index
    %c0_18 = arith.constant 0 : index
    %34 = vector.load %arg9[%c32, %c0_18] : memref<144x512xbf16, #tpu.memory_space<vmem>>, vector<16x512xbf16>
    tpu.vector_store %arg9[%c32, %c0_18], %33 {strides = array<i32>} : memref<144x512xbf16, #tpu.memory_space<vmem>>, vector<16x512xbf16>,
    %c1_i32 = arith.constant 1 : i32
    %35 = tpu.dynamic_rotate %16 by %c1_i32 dim 1 : vector<16x512xf32>, i32 -> vector<16x512xf32>
    %c3 = arith.constant 3 : index
    %c0_19 = arith.constant 0 : index
    %36 = vector.load %arg7[%c3, %c0_19] : memref<9x512xf32, #tpu.memory_space<vmem>>, vector<1x512xf32>
    %37 = vector.broadcast %36 : vector<1x512xf32> to vector<16x512xf32>
    %38 = arith.mulf %35, %37 : vector<16x512xf32>
    %39 = arith.truncf %38 : vector<16x512xf32> to vector<16x512xbf16>
    %c48 = arith.constant 48 : index
    %c0_20 = arith.constant 0 : index
    %40 = vector.load %arg9[%c48, %c0_20] : memref<144x512xbf16, #tpu.memory_space<vmem>>, vector<16x512xbf16>
    tpu.vector_store %arg9[%c48, %c0_20], %39 {strides = array<i32>} : memref<144x512xbf16, #tpu.memory_space<vmem>>, vector<16x512xbf16>,
    %c4 = arith.constant 4 : index
    %c0_21 = arith.constant 0 : index
    %41 = vector.load %arg7[%c4, %c0_21] : memref<9x512xf32, #tpu.memory_space<vmem>>, vector<1x512xf32>
    %42 = vector.broadcast %41 : vector<1x512xf32> to vector<16x512xf32>
    %43 = arith.mulf %16, %42 : vector<16x512xf32>
    %44 = arith.truncf %43 : vector<16x512xf32> to vector<16x512xbf16>
    %c64 = arith.constant 64 : index
    %c0_22 = arith.constant 0 : index
    %45 = vector.load %arg9[%c64, %c0_22] : memref<144x512xbf16, #tpu.memory_space<vmem>>, vector<16x512xbf16>
    tpu.vector_store %arg9[%c64, %c0_22], %44 {strides = array<i32>} : memref<144x512xbf16, #tpu.memory_space<vmem>>, vector<16x512xbf16>,
    %c511_i32 = arith.constant 511 : i32
    %46 = tpu.dynamic_rotate %16 by %c511_i32 dim 1 : vector<16x512xf32>, i32 -> vector<16x512xf32>
    %c5 = arith.constant 5 : index
    %c0_23 = arith.constant 0 : index
    %47 = vector.load %arg7[%c5, %c0_23] : memref<9x512xf32, #tpu.memory_space<vmem>>, vector<1x512xf32>
    %48 = vector.broadcast %47 : vector<1x512xf32> to vector<16x512xf32>
    %49 = arith.mulf %46, %48 : vector<16x512xf32>
    %50 = arith.truncf %49 : vector<16x512xf32> to vector<16x512xbf16>
    %c80 = arith.constant 80 : index
    %c0_24 = arith.constant 0 : index
    %51 = vector.load %arg9[%c80, %c0_24] : memref<144x512xbf16, #tpu.memory_space<vmem>>, vector<16x512xbf16>
    tpu.vector_store %arg9[%c80, %c0_24], %50 {strides = array<i32>} : memref<144x512xbf16, #tpu.memory_space<vmem>>, vector<16x512xbf16>,
    %c497_i32 = arith.constant 497 : i32
    %52 = tpu.dynamic_rotate %16 by %c497_i32 dim 1 : vector<16x512xf32>, i32 -> vector<16x512xf32>
    %c6 = arith.constant 6 : index
    %c0_25 = arith.constant 0 : index
    %53 = vector.load %arg7[%c6, %c0_25] : memref<9x512xf32, #tpu.memory_space<vmem>>, vector<1x512xf32>
    %54 = vector.broadcast %53 : vector<1x512xf32> to vector<16x512xf32>
    %55 = arith.mulf %52, %54 : vector<16x512xf32>
    %56 = arith.truncf %55 : vector<16x512xf32> to vector<16x512xbf16>
    %c96 = arith.constant 96 : index
    %c0_26 = arith.constant 0 : index
    %57 = vector.load %arg9[%c96, %c0_26] : memref<144x512xbf16, #tpu.memory_space<vmem>>, vector<16x512xbf16>
    tpu.vector_store %arg9[%c96, %c0_26], %56 {strides = array<i32>} : memref<144x512xbf16, #tpu.memory_space<vmem>>, vector<16x512xbf16>,
    %c496_i32 = arith.constant 496 : i32
    %58 = tpu.dynamic_rotate %16 by %c496_i32 dim 1 : vector<16x512xf32>, i32 -> vector<16x512xf32>
    %c7 = arith.constant 7 : index
    %c0_27 = arith.constant 0 : index
    %59 = vector.load %arg7[%c7, %c0_27] : memref<9x512xf32, #tpu.memory_space<vmem>>, vector<1x512xf32>
    %60 = vector.broadcast %59 : vector<1x512xf32> to vector<16x512xf32>
    %61 = arith.mulf %58, %60 : vector<16x512xf32>
    %62 = arith.truncf %61 : vector<16x512xf32> to vector<16x512xbf16>
    %c112 = arith.constant 112 : index
    %c0_28 = arith.constant 0 : index
    %63 = vector.load %arg9[%c112, %c0_28] : memref<144x512xbf16, #tpu.memory_space<vmem>>, vector<16x512xbf16>
    tpu.vector_store %arg9[%c112, %c0_28], %62 {strides = array<i32>} : memref<144x512xbf16, #tpu.memory_space<vmem>>, vector<16x512xbf16>,
    %c495_i32 = arith.constant 495 : i32
    %64 = tpu.dynamic_rotate %16 by %c495_i32 dim 1 : vector<16x512xf32>, i32 -> vector<16x512xf32>
    %c8 = arith.constant 8 : index
    %c0_29 = arith.constant 0 : index
    %65 = vector.load %arg7[%c8, %c0_29] : memref<9x512xf32, #tpu.memory_space<vmem>>, vector<1x512xf32>
    %66 = vector.broadcast %65 : vector<1x512xf32> to vector<16x512xf32>
    %67 = arith.mulf %64, %66 : vector<16x512xf32>
    %68 = arith.truncf %67 : vector<16x512xf32> to vector<16x512xbf16>
    %c128 = arith.constant 128 : index
    %c0_30 = arith.constant 0 : index
    %69 = vector.load %arg9[%c128, %c0_30] : memref<144x512xbf16, #tpu.memory_space<vmem>>, vector<16x512xbf16>
    tpu.vector_store %arg9[%c128, %c0_30], %68 {strides = array<i32>} : memref<144x512xbf16, #tpu.memory_space<vmem>>, vector<16x512xbf16>,
    %c0_31 = arith.constant 0 : index
    %c0_32 = arith.constant 0 : index
    %70 = vector.load %arg6[%c0_31, %c0_32] : memref<8x144xbf16, #tpu.memory_space<vmem>>, vector<8x144xbf16>
    %c0_33 = arith.constant 0 : index
    %c0_34 = arith.constant 0 : index
    %71 = vector.load %arg9[%c0_33, %c0_34] : memref<144x512xbf16, #tpu.memory_space<vmem>>, vector<144x512xbf16>
    %cst_35 = arith.constant dense<0.000000e+00> : vector<8x512xf32>
    %72 = tpu.matmul %70, %71, %cst_35 {dimension_numbers = #tpu.dot_dimension_numbers<[1], [0], [0], [1], [0, 0, 1, 1], [], []>} : vector<8x144xbf16>, vector<144x512xbf16>, vector<8x512xf32> -> vector<8x512xf32>
    %c0_36 = arith.constant 0 : index
    %c0_37 = arith.constant 0 : index
    %73 = vector.load %arg8[%c0_36, %c0_37] : memref<8x512xf32, #tpu.memory_space<vmem>>, vector<8x512xf32>
    tpu.vector_store %arg8[%c0_36, %c0_37], %72 {strides = array<i32>} : memref<8x512xf32, #tpu.memory_space<vmem>>, vector<8x512xf32>,
    return
  }
  func.func @transform_0(%arg0: i32) -> (i32, i32) {
    %c0_i32 = arith.constant 0 : i32
    %c0_i32_0 = arith.constant 0 : i32
    return %c0_i32, %arg0 : i32, i32
  }
  func.func @transform_1(%arg0: i32) -> (i32, i32) {
    %c0_i32 = arith.constant 0 : i32
    %c0_i32_0 = arith.constant 0 : i32
    %c0_i32_1 = arith.constant 0 : i32
    return %c0_i32, %c0_i32_0 : i32, i32
  }
  func.func @transform_2(%arg0: i32) -> (i32, i32) {
    %c0_i32 = arith.constant 0 : i32
    %c0_i32_0 = arith.constant 0 : i32
    %c0_i32_1 = arith.constant 0 : i32
    return %c0_i32, %c0_i32_0 : i32, i32
  }
  func.func @transform_3(%arg0: i32) -> (i32, i32) {
    %c0_i32 = arith.constant 0 : i32
    %c0_i32_0 = arith.constant 0 : i32
    %c0_i32_1 = arith.constant 0 : i32
    return %c0_i32, %c0_i32_0 : i32, i32
  }
  func.func @transform_4(%arg0: i32) -> (i32, i32) {
    %c0_i32 = arith.constant 0 : i32
    %c0_i32_0 = arith.constant 0 : i32
    %c0_i32_1 = arith.constant 0 : i32
    return %c0_i32, %c0_i32_0 : i32, i32
  }
  func.func @transform_5(%arg0: i32) -> (i32, i32) {
    %c0_i32 = arith.constant 0 : i32
    %c0_i32_0 = arith.constant 0 : i32
    %c0_i32_1 = arith.constant 0 : i32
    return %c0_i32, %c0_i32_0 : i32, i32
  }
  func.func @transform_6(%arg0: i32) -> (i32, i32) {
    %c0_i32 = arith.constant 0 : i32
    %c0_i32_0 = arith.constant 0 : i32
    %c0_i32_1 = arith.constant 0 : i32
    return %c0_i32, %c0_i32_0 : i32, i32
  }
  func.func @transform_7(%arg0: i32) -> (i32, i32) {
    %c0_i32 = arith.constant 0 : i32
    %c0_i32_0 = arith.constant 0 : i32
    return %c0_i32, %arg0 : i32, i32
  }
}

</mosaic_0001>

<llo_original>
// kernel: tpu_custom_call.1
$region0: #{tpu_custom_call.1}
  #allocation0 [shape = 'u32[]', space=smem, size = 0x4, offset = 0x4, fixed_abs, tag = 'smem constant byte address 0x4 - core index']
  #allocation1 [shape = 'u32[144,128]{1,0:T(1,128)}', space=vmem, size = 0x12000, scoped, tag = 'internal scratch']
  #allocation2 [shape = 'bf16[144,512]{1,0:T(16,128)(2,1)}', space=vmem, size = 0x24000, scoped, tag = 'scratch operand']
  %s0 = inlined_call_operand.hbm [shape: f32[8,512], index: 0, kind: input, shape index: {}]
  %s1 = inlined_call_operand.vmem [shape: f32[8,1], index: 1, kind: input, shape index: {}]
  %s2 = inlined_call_operand.vmem [shape: f32[8,1], index: 2, kind: input, shape index: {}]
  %s3 = inlined_call_operand.vmem [shape: bf16[16,8], index: 3, kind: input, shape index: {}]
  %s4 = inlined_call_operand.vmem [shape: f32[16,1], index: 4, kind: input, shape index: {}]
  %s5 = inlined_call_operand.hbm [shape: bf16[8,144], index: 5, kind: input, shape index: {}]
  %s6 = inlined_call_operand.vmem [shape: f32[9,512], index: 6, kind: input, shape index: {}]
  %s7 = inlined_call_operand.hbm [shape: f32[8,512], index: 7, kind: output, shape index: {}]
  %s8 = sld [smem:[#allocation0]]
  $region46: #{tpu_custom_call.1} parent=0
    _
  %s10 = ssub.s32 1, %s8
  %s11 = scalar_select 0, %s10, %s8
  $region1: #{tpu_custom_call.1} parent=0
    #allocation3 [shape = 'u8[16384]{0}', space=vmem, size = 0x4000, scoped, tag = 'input window, operand 0, single buffered']
    #allocation4 [shape = 's32[1]{0}', space=sflag, size = 0x4, scoped, tag = 'scoped memory for tpu_custom_call.1']
    #allocation5 [shape = 's32[1]{0}', space=sflag, size = 0x4, scoped, tag = 'scoped memory for tpu_custom_call.1']
    #allocation6 [shape = 'u8[4096]{0}', space=vmem, size = 0x1000, scoped, tag = 'input window, operand 5, single buffered']
    #allocation7 [shape = 's32[1]{0}', space=sflag, size = 0x4, scoped, tag = 'scoped memory for tpu_custom_call.1']
    #allocation8 [shape = 'u8[16384]{0}', space=vmem, size = 0x4000, scoped, tag = 'output window, operand 0, single buffered']
    %12 = vsyncpa [#allocation4], 0
    %13 = vsyncpa [#allocation7], 0
    %14 = vsyncpa [#allocation5], 0
    // Predicated region
    $region2: #{tpu_custom_call.1} parent=1 // pred_check
      _
    $region3: #{tpu_custom_call.1} parent=1 // pred_check_branch
      %16 = sbr.rel (0) target = $region5
    $region4: #{tpu_custom_call.1} parent=1 // pred_region
      %s18 = ssub.s32 512, 512
      %19 = vsyncadd [#allocation4], %s18
      %s21 = sshll.u32 [#allocation3], 4
      %s22 = int_to_ptr.vmem [resolvable:$true] %s21
      %24 = dma.hbm_to_vmem [thread:$0]  %s0, 512, %s22, [#allocation4]
    $region5: #{tpu_custom_call.1} parent=1 // pred_fallthru
      _
    // Predicated region
    $region6: #{tpu_custom_call.1} parent=1 // pred_check
      _
    $region7: #{tpu_custom_call.1} parent=1 // pred_check_branch
      %26 = sbr.rel (0) target = $region9
    $region8: #{tpu_custom_call.1} parent=1 // pred_region
      _
    $region9: #{tpu_custom_call.1} parent=1 // pred_fallthru
      _
    // Predicated region
    $region10: #{tpu_custom_call.1} parent=1 // pred_check
      _
    $region11: #{tpu_custom_call.1} parent=1 // pred_check_branch
      %28 = sbr.rel (0) target = $region13
    $region12: #{tpu_custom_call.1} parent=1 // pred_region
      _
    $region13: #{tpu_custom_call.1} parent=1 // pred_fallthru
      _
    // Predicated region
    $region14: #{tpu_custom_call.1} parent=1 // pred_check
      _
    $region15: #{tpu_custom_call.1} parent=1 // pred_check_branch
      %30 = sbr.rel (0) target = $region17
    $region16: #{tpu_custom_call.1} parent=1 // pred_region
      _
    $region17: #{tpu_custom_call.1} parent=1 // pred_fallthru
      _
    // Predicated region
    $region18: #{tpu_custom_call.1} parent=1 // pred_check
      _
    $region19: #{tpu_custom_call.1} parent=1 // pred_check_branch
      %32 = sbr.rel (0) target = $region21
    $region20: #{tpu_custom_call.1} parent=1 // pred_region
      _
    $region21: #{tpu_custom_call.1} parent=1 // pred_fallthru
      _
    // Predicated region
    $region22: #{tpu_custom_call.1} parent=1 // pred_check
      _
    $region23: #{tpu_custom_call.1} parent=1 // pred_check_branch
      %34 = sbr.rel (0) target = $region25
    $region24: #{tpu_custom_call.1} parent=1 // pred_region
      %s36 = ssub.s32 128, 128
      %37 = vsyncadd [#allocation7], %s36
      %s39 = sshll.u32 [#allocation6], 4
      %s40 = int_to_ptr.vmem [resolvable:$true] %s39
      %42 = dma.hbm_to_vmem [thread:$0]  %s5, 128, %s40, [#allocation7]
    $region25: #{tpu_custom_call.1} parent=1 // pred_fallthru
      _
    // Predicated region
    $region26: #{tpu_custom_call.1} parent=1 // pred_check
      _
    $region27: #{tpu_custom_call.1} parent=1 // pred_check_branch
      %44 = sbr.rel (0) target = $region29
    $region28: #{tpu_custom_call.1} parent=1 // pred_region
      _
    $region29: #{tpu_custom_call.1} parent=1 // pred_fallthru
      _
    // Predicated region
    $region30: #{tpu_custom_call.1} parent=1 // pred_check
      _
    $region31: #{tpu_custom_call.1} parent=1 // pred_check_branch
      %46 = sbr.rel (0) target = $region33
    $region32: #{tpu_custom_call.1} parent=1 // pred_region
      %47 = dma.done [#allocation4], 512
    $region33: #{tpu_custom_call.1} parent=1 // pred_fallthru
      _
    // Predicated region
    $region34: #{tpu_custom_call.1} parent=1 // pred_check
      _
    $region35: #{tpu_custom_call.1} parent=1 // pred_check_branch
      %49 = sbr.rel (0) target = $region37
    $region36: #{tpu_custom_call.1} parent=1 // pred_region
      %50 = dma.done [#allocation7], 128
    $region37: #{tpu_custom_call.1} parent=1 // pred_fallthru
      _
    %v52 = vld [vmem:[#allocation3] sm:$0xff]
    %v53 = vld [vmem:[#allocation3 + $0x8] sm:$0xff]
    %v54 = vld [vmem:[#allocation3 + $0x10] sm:$0xff]
    %v55 = vld [vmem:[#allocation3 + $0x18] sm:$0xff]
    %v56 = vld [vmem:[%s1] sm:$0xff]
    %58 = vset.pattern.permute.xlu0 0
    %59 = vperm.xlu0 %58, %v56
    %v60 = vpop.permute.xlu0 %59
    %v62 = vmul.f32 %v52, %v60
    %v63 = vmul.f32 %v53, %v60
    %v64 = vmul.f32 %v54, %v60
    %v65 = vmul.f32 %v55, %v60
    %v66 = vld [vmem:[%s2] sm:$0xff]
    %68 = vset.pattern.permute.xlu0 0
    %69 = vperm.xlu0 %68, %v66
    %v70 = vpop.permute.xlu0 %69
    %v72 = vadd.f32 %v62, %v70
    %v73 = vadd.f32 %v63, %v70
    %v74 = vadd.f32 %v64, %v70
    %v75 = vadd.f32 %v65, %v70
    %v76 = vmax.f32 %v72, 0.0
    %v77 = vmax.f32 %v73, 0.0
    %v78 = vmax.f32 %v74, 0.0
    %v79 = vmax.f32 %v75, 0.0
    %v80 = vld [vmem:[%s3] sm:$0xf]
    %v81 = vld [vmem:[%s3 + $0x4] sm:$0xf]
    %v82 = vpack.c.bf16 %v76, %v76
    %v83 = vpack.c.bf16 %v77, %v77
    %v84 = vpack.c.bf16 %v78, %v78
    %v85 = vpack.c.bf16 %v79, %v79
    %v86 = vld [vmem:[%s4] sm:$0xff]
    %v87 = vld [vmem:[%s4 + $0x8] sm:$0xff]
    %89 = vset.pattern.permute.xlu0 0
    %90 = vperm.xlu0 %89, %v86
    %v91 = vpop.permute.xlu0 %90
    %94 = vset.pattern.permute.xlu0 0
    %95 = vperm.xlu0 %94, %v87
    %v96 = vpop.permute.xlu0 %95
    %v100 = vunpack.c.l.b16 %v80
    %v101 = vunpack.c.l.b16 %v81
    %v102 = vpack.c.b16 %v101, %v100
    %vm103 = vcmask 64512
    %v105 = vsel %vm103, %v102, 0
    %vm107 = vcmask 1043456
    %v109 = vsel %vm107, %v82, 0
    %v112 = vsel %vm107, %v83, 0
    %v115 = vsel %vm107, %v84, 0
    %v118 = vsel %vm107, %v85, 0
    %120 = vmatprep.subr.bf16.mxu0 %v112
    %121 = vmatpush1.bf16.msra.mxu0 %v109
    %122 = vmatprep.subr.bf16.mxu0 0
    %123 = vmatpush1.bf16.msra.mxu0 0
    %124 = vmatprep.subr.bf16.mxu0 0
    %125 = vmatpush1.bf16.msra.mxu0 0
    %126 = vmatprep.subr.bf16.mxu0 0
    %127 = vmatpush1.bf16.msra.mxu0 0
    %128 = vmatprep.subr.bf16.mxu0 0
    %129 = vmatpush1.bf16.msra.mxu0 0
    %130 = vmatprep.subr.bf16.mxu0 0
    %131 = vmatpush1.bf16.msra.mxu0 0
    %132 = vmatprep.subr.bf16.mxu0 0
    %133 = vmatpush1.bf16.msra.mxu0 0
    %134 = vmatprep.subr.bf16.mxu0 0
    %135 = vmatpush1.bf16.msra.mxu0 0
    %136 = vmatprep.subr.bf16.mxu0 0
    %137 = vmatpush1.bf16.msra.mxu0 0
    %138 = vmatprep.subr.bf16.mxu0 0
    %139 = vmatpush1.bf16.msra.mxu0 0
    %140 = vmatprep.subr.bf16.mxu0 0
    %141 = vmatpush1.bf16.msra.mxu0 0
    %142 = vmatprep.subr.bf16.mxu0 0
    %143 = vmatpush1.bf16.msra.mxu0 0
    %144 = vmatprep.subr.bf16.mxu0 0
    %145 = vmatpush1.bf16.msra.mxu0 0
    %146 = vmatprep.subr.bf16.mxu0 0
    %147 = vmatpush1.bf16.msra.mxu0 0
    %148 = vmatprep.subr.bf16.mxu0 0
    %149 = vmatpush1.bf16.msra.mxu0 0
    %150 = vmatprep.subr.bf16.mxu0 0
    %151 = vmatpush1.bf16.msra.mxu0 0
    %152 = vmatprep.mubr.bf16.mxu0 0
    %153 = vmatmul.mubr.bf16.gmra.mrb[0].mxu0 %v105
    %v154 = vpop.f32.mrb[0].mxu0
    %v155 = vadd.f32 %v91, %v154
    %v156 = vpop.f32.mrb[0].mxu0
    %v157 = vadd.f32 %v91, %v156
    %v158 = vpop.f32.mrb[0].mxu0
    %v159 = vadd.f32 %v96, %v158
    %v160 = vpop.f32.mrb[0].mxu0
    %v161 = vadd.f32 %v96, %v160
    %162 = vdwg.mxu0
    %163 = vmatprep.subr.bf16.mxu0 %v118
    %164 = vmatpush1.bf16.msra.mxu0 %v115
    %165 = vmatprep.subr.bf16.mxu0 0
    %166 = vmatpush1.bf16.msra.mxu0 0
    %167 = vmatprep.subr.bf16.mxu0 0
    %168 = vmatpush1.bf16.msra.mxu0 0
    %169 = vmatprep.subr.bf16.mxu0 0
    %170 = vmatpush1.bf16.msra.mxu0 0
    %171 = vmatprep.subr.bf16.mxu0 0
    %172 = vmatpush1.bf16.msra.mxu0 0
    %173 = vmatprep.subr.bf16.mxu0 0
    %174 = vmatpush1.bf16.msra.mxu0 0
    %175 = vmatprep.subr.bf16.mxu0 0
    %176 = vmatpush1.bf16.msra.mxu0 0
    %177 = vmatprep.subr.bf16.mxu0 0
    %178 = vmatpush1.bf16.msra.mxu0 0
    %179 = vmatprep.subr.bf16.mxu0 0
    %180 = vmatpush1.bf16.msra.mxu0 0
    %181 = vmatprep.subr.bf16.mxu0 0
    %182 = vmatpush1.bf16.msra.mxu0 0
    %183 = vmatprep.subr.bf16.mxu0 0
    %184 = vmatpush1.bf16.msra.mxu0 0
    %185 = vmatprep.subr.bf16.mxu0 0
    %186 = vmatpush1.bf16.msra.mxu0 0
    %187 = vmatprep.subr.bf16.mxu0 0
    %188 = vmatpush1.bf16.msra.mxu0 0
    %189 = vmatprep.subr.bf16.mxu0 0
    %190 = vmatpush1.bf16.msra.mxu0 0
    %191 = vmatprep.subr.bf16.mxu0 0
    %192 = vmatpush1.bf16.msra.mxu0 0
    %193 = vmatprep.subr.bf16.mxu0 0
    %194 = vmatpush1.bf16.msra.mxu0 0
    %195 = vmatprep.mubr.bf16.mxu0 0
    %196 = vmatmul.mubr.bf16.gmra.mrb[0].mxu0 %v105
    %v197 = vpop.f32.mrb[0].mxu0
    %v198 = vadd.f32 %v91, %v197
    %v199 = vpop.f32.mrb[0].mxu0
    %v200 = vadd.f32 %v91, %v199
    %v201 = vpop.f32.mrb[0].mxu0
    %v202 = vadd.f32 %v96, %v201
    %v203 = vpop.f32.mrb[0].mxu0
    %v204 = vadd.f32 %v96, %v203
    %205 = vdwg.mxu0
    %v206 = vmax.f32 %v155, 0.0
    %v207 = vmax.f32 %v157, 0.0
    %v208 = vmax.f32 %v198, 0.0
    %v209 = vmax.f32 %v200, 0.0
    %v210 = vmax.f32 %v159, 0.0
    %v211 = vmax.f32 %v161, 0.0
    %v212 = vmax.f32 %v202, 0.0
    %v213 = vmax.f32 %v204, 0.0
    %214 = vrot.lane.b32.xlu0 %v206, 17
    %v215 = vpop.permute.xlu0 %214
    %216 = vrot.lane.b32.xlu0 %v210, 17
    %v217 = vpop.permute.xlu0 %216
    %218 = vrot.lane.b32.xlu0 %v207, 17
    %v219 = vpop.permute.xlu0 %218
    %220 = vrot.lane.b32.xlu0 %v211, 17
    %v221 = vpop.permute.xlu0 %220
    %222 = vrot.lane.b32.xlu0 %v208, 17
    %v223 = vpop.permute.xlu0 %222
    %224 = vrot.lane.b32.xlu0 %v212, 17
    %v225 = vpop.permute.xlu0 %224
    %226 = vrot.lane.b32.xlu0 %v209, 17
    %v227 = vpop.permute.xlu0 %226
    %228 = vrot.lane.b32.xlu0 %v213, 17
    %v229 = vpop.permute.xlu0 %228
    %v230 = vlaneseq
    %v231 = vand.u32 %v230, 127
    %vm232 = vcmp.lt.s32.totalorder %v231, 17
    %v233 = vsel %vm232, %v223, %v227
    %v234 = vsel %vm232, %v225, %v229
    %v235 = vsel %vm232, %v219, %v223
    %v236 = vsel %vm232, %v221, %v225
    %v237 = vsel %vm232, %v215, %v219
    %v238 = vsel %vm232, %v217, %v221
    %v239 = vsel %vm232, %v227, %v215
    %v240 = vsel %vm232, %v229, %v217
    %v241 = vld [vmem:[%s6] ss:$8 sm:$0xf]
    %v243 = vlaneseq
    %v244 = vshrl.u32 %v243, 7
    %v245 = vsub.s32 0, %v244
    %v246 = vrot.slane %v241, %v245
    %v247 = vlaneseq
    %v248 = vshrl.u32 %v247, 7
    %v249 = vsub.s32 1, %v248
    %v250 = vrot.slane %v241, %v249
    %v251 = vlaneseq
    %v252 = vshrl.u32 %v251, 7
    %v253 = vsub.s32 2, %v252
    %v254 = vrot.slane %v241, %v253
    %v255 = vlaneseq
    %v256 = vshrl.u32 %v255, 7
    %v257 = vsub.s32 3, %v256
    %v258 = vrot.slane %v241, %v257
    %v263 = vmul.f32 %v239, %v246
    %v264 = vmul.f32 %v237, %v250
    %v265 = vmul.f32 %v235, %v254
    %v266 = vmul.f32 %v233, %v258
    %v267 = vmul.f32 %v240, %v246
    %v268 = vmul.f32 %v238, %v250
    %v269 = vmul.f32 %v236, %v254
    %v270 = vmul.f32 %v234, %v258
    %v271 = vpack.c.bf16 %v267, %v263
    %v272 = vpack.c.bf16 %v268, %v264
    %v273 = vpack.c.bf16 %v269, %v265
    %v274 = vpack.c.bf16 %v270, %v266
    %275 = vst [vmem:[#allocation2] sm:$0xff] %v271
    %276 = vst [vmem:[#allocation2 + $0x8] sm:$0xff] %v272
    %277 = vst [vmem:[#allocation2 + $0x10] sm:$0xff] %v273
    %278 = vst [vmem:[#allocation2 + $0x18] sm:$0xff] %v274
    %279 = vrot.lane.b32.xlu0 %v206, 16
    %v280 = vpop.permute.xlu0 %279
    %281 = vrot.lane.b32.xlu0 %v210, 16
    %v282 = vpop.permute.xlu0 %281
    %283 = vrot.lane.b32.xlu0 %v207, 16
    %v284 = vpop.permute.xlu0 %283
    %285 = vrot.lane.b32.xlu0 %v211, 16
    %v286 = vpop.permute.xlu0 %285
    %287 = vrot.lane.b32.xlu0 %v208, 16
    %v288 = vpop.permute.xlu0 %287
    %289 = vrot.lane.b32.xlu0 %v212, 16
    %v290 = vpop.permute.xlu0 %289
    %291 = vrot.lane.b32.xlu0 %v209, 16
    %v292 = vpop.permute.xlu0 %291
    %293 = vrot.lane.b32.xlu0 %v213, 16
    %v294 = vpop.permute.xlu0 %293
    %vm295 = vcmp.lt.s32.totalorder %v231, 16
    %v296 = vsel %vm295, %v288, %v292
    %v297 = vsel %vm295, %v290, %v294
    %v298 = vsel %vm295, %v284, %v288
    %v299 = vsel %vm295, %v286, %v290
    %v300 = vsel %vm295, %v280, %v284
    %v301 = vsel %vm295, %v282, %v286
    %v302 = vsel %vm295, %v292, %v280
    %v303 = vsel %vm295, %v294, %v282
    %s304 = scalar_lea.vmem %s6, 1
    %v305 = vld [vmem:[%s304] ss:$8 sm:$0xf]
    %v307 = vlaneseq
    %v308 = vshrl.u32 %v307, 7
    %v309 = vsub.s32 0, %v308
    %v310 = vrot.slane %v305, %v309
    %v311 = vlaneseq
    %v312 = vshrl.u32 %v311, 7
    %v313 = vsub.s32 1, %v312
    %v314 = vrot.slane %v305, %v313
    %v315 = vlaneseq
    %v316 = vshrl.u32 %v315, 7
    %v317 = vsub.s32 2, %v316
    %v318 = vrot.slane %v305, %v317
    %v319 = vlaneseq
    %v320 = vshrl.u32 %v319, 7
    %v321 = vsub.s32 3, %v320
    %v322 = vrot.slane %v305, %v321
    %v327 = vmul.f32 %v302, %v310
    %v328 = vmul.f32 %v300, %v314
    %v329 = vmul.f32 %v298, %v318
    %v330 = vmul.f32 %v296, %v322
    %v331 = vmul.f32 %v303, %v310
    %v332 = vmul.f32 %v301, %v314
    %v333 = vmul.f32 %v299, %v318
    %v334 = vmul.f32 %v297, %v322
    %v335 = vpack.c.bf16 %v331, %v327
    %v336 = vpack.c.bf16 %v332, %v328
    %v337 = vpack.c.bf16 %v333, %v329
    %v338 = vpack.c.bf16 %v334, %v330
    %339 = vst [vmem:[#allocation2 + $0x20] sm:$0xff] %v335
    %340 = vst [vmem:[#allocation2 + $0x28] sm:$0xff] %v336
    %341 = vst [vmem:[#allocation2 + $0x30] sm:$0xff] %v337
    %342 = vst [vmem:[#allocation2 + $0x38] sm:$0xff] %v338
    %343 = vrot.lane.b32.xlu0 %v206, 15
    %v344 = vpop.permute.xlu0 %343
    %345 = vrot.lane.b32.xlu0 %v210, 15
    %v346 = vpop.permute.xlu0 %345
    %347 = vrot.lane.b32.xlu0 %v207, 15
    %v348 = vpop.permute.xlu0 %347
    %349 = vrot.lane.b32.xlu0 %v211, 15
    %v350 = vpop.permute.xlu0 %349
    %351 = vrot.lane.b32.xlu0 %v208, 15
    %v352 = vpop.permute.xlu0 %351
    %353 = vrot.lane.b32.xlu0 %v212, 15
    %v354 = vpop.permute.xlu0 %353
    %355 = vrot.lane.b32.xlu0 %v209, 15
    %v356 = vpop.permute.xlu0 %355
    %357 = vrot.lane.b32.xlu0 %v213, 15
    %v358 = vpop.permute.xlu0 %357
    %vm359 = vcmp.lt.s32.totalorder %v231, 15
    %v360 = vsel %vm359, %v352, %v356
    %v361 = vsel %vm359, %v354, %v358
    %v362 = vsel %vm359, %v348, %v352
    %v363 = vsel %vm359, %v350, %v354
    %v364 = vsel %vm359, %v344, %v348
    %v365 = vsel %vm359, %v346, %v350
    %v366 = vsel %vm359, %v356, %v344
    %v367 = vsel %vm359, %v358, %v346
    %s368 = scalar_lea.vmem %s6, 2
    %v369 = vld [vmem:[%s368] ss:$8 sm:$0xf]
    %v371 = vlaneseq
    %v372 = vshrl.u32 %v371, 7
    %v373 = vsub.s32 0, %v372
    %v374 = vrot.slane %v369, %v373
    %v375 = vlaneseq
    %v376 = vshrl.u32 %v375, 7
    %v377 = vsub.s32 1, %v376
    %v378 = vrot.slane %v369, %v377
    %v379 = vlaneseq
    %v380 = vshrl.u32 %v379, 7
    %v381 = vsub.s32 2, %v380
    %v382 = vrot.slane %v369, %v381
    %v383 = vlaneseq
    %v384 = vshrl.u32 %v383, 7
    %v385 = vsub.s32 3, %v384
    %v386 = vrot.slane %v369, %v385
    %v391 = vmul.f32 %v366, %v374
    %v392 = vmul.f32 %v364, %v378
    %v393 = vmul.f32 %v362, %v382
    %v394 = vmul.f32 %v360, %v386
    %v395 = vmul.f32 %v367, %v374
    %v396 = vmul.f32 %v365, %v378
    %v397 = vmul.f32 %v363, %v382
    %v398 = vmul.f32 %v361, %v386
    %v399 = vpack.c.bf16 %v395, %v391
    %v400 = vpack.c.bf16 %v396, %v392
    %v401 = vpack.c.bf16 %v397, %v393
    %v402 = vpack.c.bf16 %v398, %v394
    %403 = vst [vmem:[#allocation2 + $0x40] sm:$0xff] %v399
    %404 = vst [vmem:[#allocation2 + $0x48] sm:$0xff] %v400
    %405 = vst [vmem:[#allocation2 + $0x50] sm:$0xff] %v401
    %406 = vst [vmem:[#allocation2 + $0x58] sm:$0xff] %v402
    %407 = vrot.lane.b32.xlu0 %v206, 1
    %v408 = vpop.permute.xlu0 %407
    %409 = vrot.lane.b32.xlu0 %v210, 1
    %v410 = vpop.permute.xlu0 %409
    %411 = vrot.lane.b32.xlu0 %v207, 1
    %v412 = vpop.permute.xlu0 %411
    %413 = vrot.lane.b32.xlu0 %v211, 1
    %v414 = vpop.permute.xlu0 %413
    %415 = vrot.lane.b32.xlu0 %v208, 1
    %v416 = vpop.permute.xlu0 %415
    %417 = vrot.lane.b32.xlu0 %v212, 1
    %v418 = vpop.permute.xlu0 %417
    %419 = vrot.lane.b32.xlu0 %v209, 1
    %v420 = vpop.permute.xlu0 %419
    %421 = vrot.lane.b32.xlu0 %v213, 1
    %v422 = vpop.permute.xlu0 %421
    %vm423 = vcmp.lt.s32.totalorder %v231, 1
    %v424 = vsel %vm423, %v416, %v420
    %v425 = vsel %vm423, %v418, %v422
    %v426 = vsel %vm423, %v412, %v416
    %v427 = vsel %vm423, %v414, %v418
    %v428 = vsel %vm423, %v408, %v412
    %v429 = vsel %vm423, %v410, %v414
    %v430 = vsel %vm423, %v420, %v408
    %v431 = vsel %vm423, %v422, %v410
    %s432 = scalar_lea.vmem %s6, 3
    %v433 = vld [vmem:[%s432] ss:$8 sm:$0xf]
    %v435 = vlaneseq
    %v436 = vshrl.u32 %v435, 7
    %v437 = vsub.s32 0, %v436
    %v438 = vrot.slane %v433, %v437
    %v439 = vlaneseq
    %v440 = vshrl.u32 %v439, 7
    %v441 = vsub.s32 1, %v440
    %v442 = vrot.slane %v433, %v441
    %v443 = vlaneseq
    %v444 = vshrl.u32 %v443, 7
    %v445 = vsub.s32 2, %v444
    %v446 = vrot.slane %v433, %v445
    %v447 = vlaneseq
    %v448 = vshrl.u32 %v447, 7
    %v449 = vsub.s32 3, %v448
    %v450 = vrot.slane %v433, %v449
    %v455 = vmul.f32 %v430, %v438
    %v456 = vmul.f32 %v428, %v442
    %v457 = vmul.f32 %v426, %v446
    %v458 = vmul.f32 %v424, %v450
    %v459 = vmul.f32 %v431, %v438
    %v460 = vmul.f32 %v429, %v442
    %v461 = vmul.f32 %v427, %v446
    %v462 = vmul.f32 %v425, %v450
    %v463 = vpack.c.bf16 %v459, %v455
    %v464 = vpack.c.bf16 %v460, %v456
    %v465 = vpack.c.bf16 %v461, %v457
    %v466 = vpack.c.bf16 %v462, %v458
    %467 = vst [vmem:[#allocation2 + $0x60] sm:$0xff] %v463
    %468 = vst [vmem:[#allocation2 + $0x68] sm:$0xff] %v464
    %469 = vst [vmem:[#allocation2 + $0x70] sm:$0xff] %v465
    %470 = vst [vmem:[#allocation2 + $0x78] sm:$0xff] %v466
    %s471 = scalar_lea.vmem %s6, 4
    %v472 = vld [vmem:[%s471] ss:$8 sm:$0xf]
    %v474 = vlaneseq
    %v475 = vshrl.u32 %v474, 7
    %v476 = vsub.s32 0, %v475
    %v477 = vrot.slane %v472, %v476
    %v478 = vlaneseq
    %v479 = vshrl.u32 %v478, 7
    %v480 = vsub.s32 1, %v479
    %v481 = vrot.slane %v472, %v480
    %v482 = vlaneseq
    %v483 = vshrl.u32 %v482, 7
    %v484 = vsub.s32 2, %v483
    %v485 = vrot.slane %v472, %v484
    %v486 = vlaneseq
    %v487 = vshrl.u32 %v486, 7
    %v488 = vsub.s32 3, %v487
    %v489 = vrot.slane %v472, %v488
    %v494 = vmul.f32 %v206, %v477
    %v495 = vmul.f32 %v207, %v481
    %v496 = vmul.f32 %v208, %v485
    %v497 = vmul.f32 %v209, %v489
    %v498 = vmul.f32 %v210, %v477
    %v499 = vmul.f32 %v211, %v481
    %v500 = vmul.f32 %v212, %v485
    %v501 = vmul.f32 %v213, %v489
    %v502 = vpack.c.bf16 %v498, %v494
    %v503 = vpack.c.bf16 %v499, %v495
    %v504 = vpack.c.bf16 %v500, %v496
    %v505 = vpack.c.bf16 %v501, %v497
    %506 = vst [vmem:[#allocation2 + $0x80] sm:$0xff] %v502
    %507 = vst [vmem:[#allocation2 + $0x88] sm:$0xff] %v503
    %508 = vst [vmem:[#allocation2 + $0x90] sm:$0xff] %v504
    %509 = vst [vmem:[#allocation2 + $0x98] sm:$0xff] %v505
    %510 = vrot.lane.b32.xlu0 %v206, 127
    %v511 = vpop.permute.xlu0 %510
    %512 = vrot.lane.b32.xlu0 %v210, 127
    %v513 = vpop.permute.xlu0 %512
    %514 = vrot.lane.b32.xlu0 %v207, 127
    %v515 = vpop.permute.xlu0 %514
    %516 = vrot.lane.b32.xlu0 %v211, 127
    %v517 = vpop.permute.xlu0 %516
    %518 = vrot.lane.b32.xlu0 %v208, 127
    %v519 = vpop.permute.xlu0 %518
    %520 = vrot.lane.b32.xlu0 %v212, 127
    %v521 = vpop.permute.xlu0 %520
    %522 = vrot.lane.b32.xlu0 %v209, 127
    %v523 = vpop.permute.xlu0 %522
    %524 = vrot.lane.b32.xlu0 %v213, 127
    %v525 = vpop.permute.xlu0 %524
    %vm526 = vcmp.lt.s32.totalorder %v231, 127
    %v527 = vsel %vm526, %v519, %v523
    %v528 = vsel %vm526, %v521, %v525
    %v529 = vsel %vm526, %v515, %v519
    %v530 = vsel %vm526, %v517, %v521
    %v531 = vsel %vm526, %v511, %v515
    %v532 = vsel %vm526, %v513, %v517
    %v533 = vsel %vm526, %v523, %v511
    %v534 = vsel %vm526, %v525, %v513
    %s535 = scalar_lea.vmem %s6, 5
    %v536 = vld [vmem:[%s535] ss:$8 sm:$0xf]
    %v538 = vlaneseq
    %v539 = vshrl.u32 %v538, 7
    %v540 = vsub.s32 0, %v539
    %v541 = vrot.slane %v536, %v540
    %v542 = vlaneseq
    %v543 = vshrl.u32 %v542, 7
    %v544 = vsub.s32 1, %v543
    %v545 = vrot.slane %v536, %v544
    %v546 = vlaneseq
    %v547 = vshrl.u32 %v546, 7
    %v548 = vsub.s32 2, %v547
    %v549 = vrot.slane %v536, %v548
    %v550 = vlaneseq
    %v551 = vshrl.u32 %v550, 7
    %v552 = vsub.s32 3, %v551
    %v553 = vrot.slane %v536, %v552
    %v558 = vmul.f32 %v531, %v541
    %v559 = vmul.f32 %v529, %v545
    %v560 = vmul.f32 %v527, %v549
    %v561 = vmul.f32 %v533, %v553
    %v562 = vmul.f32 %v532, %v541
    %v563 = vmul.f32 %v530, %v545
    %v564 = vmul.f32 %v528, %v549
    %v565 = vmul.f32 %v534, %v553
    %v566 = vpack.c.bf16 %v562, %v558
    %v567 = vpack.c.bf16 %v563, %v559
    %v568 = vpack.c.bf16 %v564, %v560
    %v569 = vpack.c.bf16 %v565, %v561
    %570 = vst [vmem:[#allocation2 + $0xa0] sm:$0xff] %v566
    %571 = vst [vmem:[#allocation2 + $0xa8] sm:$0xff] %v567
    %572 = vst [vmem:[#allocation2 + $0xb0] sm:$0xff] %v568
    %573 = vst [vmem:[#allocation2 + $0xb8] sm:$0xff] %v569
    %574 = vrot.lane.b32.xlu0 %v206, 113
    %v575 = vpop.permute.xlu0 %574
    %576 = vrot.lane.b32.xlu0 %v210, 113
    %v577 = vpop.permute.xlu0 %576
    %578 = vrot.lane.b32.xlu0 %v207, 113
    %v579 = vpop.permute.xlu0 %578
    %580 = vrot.lane.b32.xlu0 %v211, 113
    %v581 = vpop.permute.xlu0 %580
    %582 = vrot.lane.b32.xlu0 %v208, 113
    %v583 = vpop.permute.xlu0 %582
    %584 = vrot.lane.b32.xlu0 %v212, 113
    %v585 = vpop.permute.xlu0 %584
    %586 = vrot.lane.b32.xlu0 %v209, 113
    %v587 = vpop.permute.xlu0 %586
    %588 = vrot.lane.b32.xlu0 %v213, 113
    %v589 = vpop.permute.xlu0 %588
    %vm590 = vcmp.lt.s32.totalorder %v231, 113
    %v591 = vsel %vm590, %v583, %v587
    %v592 = vsel %vm590, %v585, %v589
    %v593 = vsel %vm590, %v579, %v583
    %v594 = vsel %vm590, %v581, %v585
    %v595 = vsel %vm590, %v575, %v579
    %v596 = vsel %vm590, %v577, %v581
    %v597 = vsel %vm590, %v587, %v575
    %v598 = vsel %vm590, %v589, %v577
    %s599 = scalar_lea.vmem %s6, 6
    %v600 = vld [vmem:[%s599] ss:$8 sm:$0xf]
    %v602 = vlaneseq
    %v603 = vshrl.u32 %v602, 7
    %v604 = vsub.s32 0, %v603
    %v605 = vrot.slane %v600, %v604
    %v606 = vlaneseq
    %v607 = vshrl.u32 %v606, 7
    %v608 = vsub.s32 1, %v607
    %v609 = vrot.slane %v600, %v608
    %v610 = vlaneseq
    %v611 = vshrl.u32 %v610, 7
    %v612 = vsub.s32 2, %v611
    %v613 = vrot.slane %v600, %v612
    %v614 = vlaneseq
    %v615 = vshrl.u32 %v614, 7
    %v616 = vsub.s32 3, %v615
    %v617 = vrot.slane %v600, %v616
    %v622 = vmul.f32 %v595, %v605
    %v623 = vmul.f32 %v593, %v609
    %v624 = vmul.f32 %v591, %v613
    %v625 = vmul.f32 %v597, %v617
    %v626 = vmul.f32 %v596, %v605
    %v627 = vmul.f32 %v594, %v609
    %v628 = vmul.f32 %v592, %v613
    %v629 = vmul.f32 %v598, %v617
    %v630 = vpack.c.bf16 %v626, %v622
    %v631 = vpack.c.bf16 %v627, %v623
    %v632 = vpack.c.bf16 %v628, %v624
    %v633 = vpack.c.bf16 %v629, %v625
    %634 = vst [vmem:[#allocation2 + $0xc0] sm:$0xff] %v630
    %635 = vst [vmem:[#allocation2 + $0xc8] sm:$0xff] %v631
    %636 = vst [vmem:[#allocation2 + $0xd0] sm:$0xff] %v632
    %637 = vst [vmem:[#allocation2 + $0xd8] sm:$0xff] %v633
    %638 = vrot.lane.b32.xlu0 %v206, 112
    %v639 = vpop.permute.xlu0 %638
    %640 = vrot.lane.b32.xlu0 %v210, 112
    %v641 = vpop.permute.xlu0 %640
    %642 = vrot.lane.b32.xlu0 %v207, 112
    %v643 = vpop.permute.xlu0 %642
    %644 = vrot.lane.b32.xlu0 %v211, 112
    %v645 = vpop.permute.xlu0 %644
    %646 = vrot.lane.b32.xlu0 %v208, 112
    %v647 = vpop.permute.xlu0 %646
    %648 = vrot.lane.b32.xlu0 %v212, 112
    %v649 = vpop.permute.xlu0 %648
    %650 = vrot.lane.b32.xlu0 %v209, 112
    %v651 = vpop.permute.xlu0 %650
    %652 = vrot.lane.b32.xlu0 %v213, 112
    %v653 = vpop.permute.xlu0 %652
    %vm654 = vcmp.lt.s32.totalorder %v231, 112
    %v655 = vsel %vm654, %v647, %v651
    %v656 = vsel %vm654, %v649, %v653
    %v657 = vsel %vm654, %v643, %v647
    %v658 = vsel %vm654, %v645, %v649
    %v659 = vsel %vm654, %v639, %v643
    %v660 = vsel %vm654, %v641, %v645
    %v661 = vsel %vm654, %v651, %v639
    %v662 = vsel %vm654, %v653, %v641
    %s663 = scalar_lea.vmem %s6, 7
    %v664 = vld [vmem:[%s663] ss:$8 sm:$0xf]
    %v666 = vlaneseq
    %v667 = vshrl.u32 %v666, 7
    %v668 = vsub.s32 0, %v667
    %v669 = vrot.slane %v664, %v668
    %v670 = vlaneseq
    %v671 = vshrl.u32 %v670, 7
    %v672 = vsub.s32 1, %v671
    %v673 = vrot.slane %v664, %v672
    %v674 = vlaneseq
    %v675 = vshrl.u32 %v674, 7
    %v676 = vsub.s32 2, %v675
    %v677 = vrot.slane %v664, %v676
    %v678 = vlaneseq
    %v679 = vshrl.u32 %v678, 7
    %v680 = vsub.s32 3, %v679
    %v681 = vrot.slane %v664, %v680
    %v686 = vmul.f32 %v659, %v669
    %v687 = vmul.f32 %v657, %v673
    %v688 = vmul.f32 %v655, %v677
    %v689 = vmul.f32 %v661, %v681
    %v690 = vmul.f32 %v660, %v669
    %v691 = vmul.f32 %v658, %v673
    %v692 = vmul.f32 %v656, %v677
    %v693 = vmul.f32 %v662, %v681
    %v694 = vpack.c.bf16 %v690, %v686
    %v695 = vpack.c.bf16 %v691, %v687
    %v696 = vpack.c.bf16 %v692, %v688
    %v697 = vpack.c.bf16 %v693, %v689
    %698 = vst [vmem:[#allocation2 + $0xe0] sm:$0xff] %v694
    %699 = vst [vmem:[#allocation2 + $0xe8] sm:$0xff] %v695
    %700 = vst [vmem:[#allocation2 + $0xf0] sm:$0xff] %v696
    %701 = vst [vmem:[#allocation2 + $0xf8] sm:$0xff] %v697
    %702 = vrot.lane.b32.xlu0 %v206, 111
    %v703 = vpop.permute.xlu0 %702
    %704 = vrot.lane.b32.xlu0 %v210, 111
    %v705 = vpop.permute.xlu0 %704
    %706 = vrot.lane.b32.xlu0 %v207, 111
    %v707 = vpop.permute.xlu0 %706
    %708 = vrot.lane.b32.xlu0 %v211, 111
    %v709 = vpop.permute.xlu0 %708
    %710 = vrot.lane.b32.xlu0 %v208, 111
    %v711 = vpop.permute.xlu0 %710
    %712 = vrot.lane.b32.xlu0 %v212, 111
    %v713 = vpop.permute.xlu0 %712
    %714 = vrot.lane.b32.xlu0 %v209, 111
    %v715 = vpop.permute.xlu0 %714
    %716 = vrot.lane.b32.xlu0 %v213, 111
    %v717 = vpop.permute.xlu0 %716
    %vm718 = vcmp.lt.s32.totalorder %v231, 111
    %v719 = vsel %vm718, %v711, %v715
    %v720 = vsel %vm718, %v713, %v717
    %v721 = vsel %vm718, %v707, %v711
    %v722 = vsel %vm718, %v709, %v713
    %v723 = vsel %vm718, %v703, %v707
    %v724 = vsel %vm718, %v705, %v709
    %v725 = vsel %vm718, %v715, %v703
    %v726 = vsel %vm718, %v717, %v705
    %s727 = scalar_lea.vmem %s6, 32
    %v728 = vld [vmem:[%s727] ss:$8 sm:$0xf]
    %v730 = vlaneseq
    %v731 = vshrl.u32 %v730, 7
    %v732 = vsub.s32 0, %v731
    %v733 = vrot.slane %v728, %v732
    %v734 = vlaneseq
    %v735 = vshrl.u32 %v734, 7
    %v736 = vsub.s32 1, %v735
    %v737 = vrot.slane %v728, %v736
    %v738 = vlaneseq
    %v739 = vshrl.u32 %v738, 7
    %v740 = vsub.s32 2, %v739
    %v741 = vrot.slane %v728, %v740
    %v742 = vlaneseq
    %v743 = vshrl.u32 %v742, 7
    %v744 = vsub.s32 3, %v743
    %v745 = vrot.slane %v728, %v744
    %v750 = vmul.f32 %v723, %v733
    %v751 = vmul.f32 %v721, %v737
    %v752 = vmul.f32 %v719, %v741
    %v753 = vmul.f32 %v725, %v745
    %v754 = vmul.f32 %v724, %v733
    %v755 = vmul.f32 %v722, %v737
    %v756 = vmul.f32 %v720, %v741
    %v757 = vmul.f32 %v726, %v745
    %v758 = vpack.c.bf16 %v754, %v750
    %v759 = vpack.c.bf16 %v755, %v751
    %v760 = vpack.c.bf16 %v756, %v752
    %v761 = vpack.c.bf16 %v757, %v753
    %762 = vst [vmem:[#allocation2 + $0x100] sm:$0xff] %v758
    %763 = vst [vmem:[#allocation2 + $0x108] sm:$0xff] %v759
    %764 = vst [vmem:[#allocation2 + $0x110] sm:$0xff] %v760
    %765 = vst [vmem:[#allocation2 + $0x118] sm:$0xff] %v761
    %v766 = vld [vmem:[#allocation6] sm:$0xff]
    %v767 = vld [vmem:[#allocation2] sm:$0xff]
    %v768 = vld [vmem:[#allocation2 + $0x8] sm:$0xff]
    %v769 = vld [vmem:[#allocation2 + $0x10] sm:$0xff]
    %v770 = vld [vmem:[#allocation2 + $0x18] sm:$0xff]
    %v771 = vld [vmem:[#allocation2 + $0x20] sm:$0xff]
    %v772 = vld [vmem:[#allocation2 + $0x28] sm:$0xff]
    %v773 = vld [vmem:[#allocation2 + $0x30] sm:$0xff]
    %v774 = vld [vmem:[#allocation2 + $0x38] sm:$0xff]
    %v775 = vld [vmem:[#allocation2 + $0x40] sm:$0xff]
    %v776 = vld [vmem:[#allocation2 + $0x48] sm:$0xff]
    %v777 = vld [vmem:[#allocation2 + $0x50] sm:$0xff]
    %v778 = vld [vmem:[#allocation2 + $0x58] sm:$0xff]
    %v779 = vld [vmem:[#allocation2 + $0x60] sm:$0xff]
    %v780 = vld [vmem:[#allocation2 + $0x68] sm:$0xff]
    %v781 = vld [vmem:[#allocation2 + $0x70] sm:$0xff]
    %v782 = vld [vmem:[#allocation2 + $0x78] sm:$0xff]
    %v783 = vld [vmem:[#allocation2 + $0x80] sm:$0xff]
    %v784 = vld [vmem:[#allocation2 + $0x88] sm:$0xff]
    %v785 = vld [vmem:[#allocation2 + $0x90] sm:$0xff]
    %v786 = vld [vmem:[#allocation2 + $0x98] sm:$0xff]
    %v787 = vld [vmem:[#allocation2 + $0xa0] sm:$0xff]
    %v788 = vld [vmem:[#allocation2 + $0xa8] sm:$0xff]
    %v789 = vld [vmem:[#allocation2 + $0xb0] sm:$0xff]
    %v790 = vld [vmem:[#allocation2 + $0xb8] sm:$0xff]
    %v791 = vld [vmem:[#allocation2 + $0xc0] sm:$0xff]
    %v792 = vld [vmem:[#allocation2 + $0xc8] sm:$0xff]
    %v793 = vld [vmem:[#allocation2 + $0xd0] sm:$0xff]
    %v794 = vld [vmem:[#allocation2 + $0xd8] sm:$0xff]
    %v795 = vld [vmem:[#allocation2 + $0xe0] sm:$0xff]
    %v796 = vld [vmem:[#allocation2 + $0xe8] sm:$0xff]
    %v797 = vld [vmem:[#allocation2 + $0xf0] sm:$0xff]
    %v798 = vld [vmem:[#allocation2 + $0xf8] sm:$0xff]
    %v799 = vld [vmem:[#allocation2 + $0x100] sm:$0xff]
    %v800 = vld [vmem:[#allocation2 + $0x108] sm:$0xff]
    %v801 = vld [vmem:[#allocation2 + $0x110] sm:$0xff]
    %v802 = vld [vmem:[#allocation2 + $0x118] sm:$0xff]
    %v804 = vunpack.c.l.b16 %v766
    %v805 = vunpack.c.h.b16 %v766
    %v806 = vpack.c.b16 %v804, %v804
    %v807 = vpack.c.b16 %v805, %v805
    %vm809 = vcmask 130048
    %v811 = vsel %vm809, %v807, 0
    %813 = vmatprep.subr.bf16.mxu0 %v768
    %814 = vmatpush1.bf16.msra.mxu0 %v767
    %815 = vmatprep.subr.bf16.mxu0 %v772
    %816 = vmatpush1.bf16.msra.mxu0 %v771
    %817 = vmatprep.subr.bf16.mxu0 %v776
    %818 = vmatpush1.bf16.msra.mxu0 %v775
    %819 = vmatprep.subr.bf16.mxu0 %v780
    %820 = vmatpush1.bf16.msra.mxu0 %v779
    %821 = vmatprep.subr.bf16.mxu0 %v784
    %822 = vmatpush1.bf16.msra.mxu0 %v783
    %823 = vmatprep.subr.bf16.mxu0 %v788
    %824 = vmatpush1.bf16.msra.mxu0 %v787
    %825 = vmatprep.subr.bf16.mxu0 %v792
    %826 = vmatpush1.bf16.msra.mxu0 %v791
    %827 = vmatprep.subr.bf16.mxu0 %v796
    %828 = vmatpush1.bf16.msra.mxu0 %v795
    %829 = vmatprep.subr.bf16.mxu0 %v800
    %830 = vmatpush1.bf16.msra.mxu0 %v799
    %831 = vmatprep.subr.bf16.mxu0 0
    %832 = vmatpush1.bf16.msra.mxu0 0
    %833 = vmatprep.subr.bf16.mxu0 0
    %834 = vmatpush1.bf16.msra.mxu0 0
    %835 = vmatprep.subr.bf16.mxu0 0
    %836 = vmatpush1.bf16.msra.mxu0 0
    %837 = vmatprep.subr.bf16.mxu0 0
    %838 = vmatpush1.bf16.msra.mxu0 0
    %839 = vmatprep.subr.bf16.mxu0 0
    %840 = vmatpush1.bf16.msra.mxu0 0
    %841 = vmatprep.subr.bf16.mxu0 0
    %842 = vmatpush1.bf16.msra.mxu0 0
    %843 = vmatprep.subr.bf16.mxu0 0
    %844 = vmatpush1.bf16.msra.mxu0 0
    %845 = vmatprep.mubr.bf16.mxu0 %v811
    %846 = vmatmul.mubr.bf16.gmra.mrb[0].mxu0 %v806
    %v847 = vpop.f32.mrb[0].mxu0
    %v848 = vadd.f32 0.0, %v847
    %v849 = vpop.f32.mrb[0].mxu0
    %v850 = vadd.f32 0.0, %v849
    %v851 = vpop.f32.mrb[0].mxu0
    %v852 = vpop.f32.mrb[0].mxu0
    %853 = vdwg.mxu0
    %854 = vmatprep.subr.bf16.mxu0 %v770
    %855 = vmatpush1.bf16.msra.mxu0 %v769
    %856 = vmatprep.subr.bf16.mxu0 %v774
    %857 = vmatpush1.bf16.msra.mxu0 %v773
    %858 = vmatprep.subr.bf16.mxu0 %v778
    %859 = vmatpush1.bf16.msra.mxu0 %v777
    %860 = vmatprep.subr.bf16.mxu0 %v782
    %861 = vmatpush1.bf16.msra.mxu0 %v781
    %862 = vmatprep.subr.bf16.mxu0 %v786
    %863 = vmatpush1.bf16.msra.mxu0 %v785
    %864 = vmatprep.subr.bf16.mxu0 %v790
    %865 = vmatpush1.bf16.msra.mxu0 %v789
    %866 = vmatprep.subr.bf16.mxu0 %v794
    %867 = vmatpush1.bf16.msra.mxu0 %v793
    %868 = vmatprep.subr.bf16.mxu0 %v798
    %869 = vmatpush1.bf16.msra.mxu0 %v797
    %870 = vmatprep.subr.bf16.mxu0 %v802
    %871 = vmatpush1.bf16.msra.mxu0 %v801
    %872 = vmatprep.subr.bf16.mxu0 0
    %873 = vmatpush1.bf16.msra.mxu0 0
    %874 = vmatprep.subr.bf16.mxu0 0
    %875 = vmatpush1.bf16.msra.mxu0 0
    %876 = vmatprep.subr.bf16.mxu0 0
    %877 = vmatpush1.bf16.msra.mxu0 0
    %878 = vmatprep.subr.bf16.mxu0 0
    %879 = vmatpush1.bf16.msra.mxu0 0
    %880 = vmatprep.subr.bf16.mxu0 0
    %881 = vmatpush1.bf16.msra.mxu0 0
    %882 = vmatprep.subr.bf16.mxu0 0
    %883 = vmatpush1.bf16.msra.mxu0 0
    %884 = vmatprep.subr.bf16.mxu0 0
    %885 = vmatpush1.bf16.msra.mxu0 0
    %886 = vmatprep.mubr.bf16.mxu0 %v811
    %887 = vmatmul.mubr.bf16.gmra.mrb[0].mxu0 %v806
    %v888 = vpop.f32.mrb[0].mxu0
    %v889 = vadd.f32 0.0, %v888
    %v890 = vpop.f32.mrb[0].mxu0
    %v891 = vadd.f32 0.0, %v890
    %v892 = vpop.f32.mrb[0].mxu0
    %v893 = vpop.f32.mrb[0].mxu0
    %894 = vdwg.mxu0
    %895 = vst [vmem:[#allocation8] sm:$0xff] %v848
    %896 = vst [vmem:[#allocation8 + $0x8] sm:$0xff] %v850
    %897 = vst [vmem:[#allocation8 + $0x10] sm:$0xff] %v889
    %898 = vst [vmem:[#allocation8 + $0x18] sm:$0xff] %v891
    // Predicated region
    $region38: #{tpu_custom_call.1} parent=1 // pred_check
      _
    $region39: #{tpu_custom_call.1} parent=1 // pred_check_branch
      %900 = sbr.rel (0) target = $region41
    $region40: #{tpu_custom_call.1} parent=1 // pred_region
      %s902 = ssub.s32 512, 512
      %903 = vsyncadd [#allocation5], %s902
      %s905 = sshll.u32 [#allocation8], 4
      %s906 = int_to_ptr.vmem [resolvable:$true] %s905
      %908 = dma.vmem_to_hbm [thread:$0]  %s906, 512, %s7, [#allocation5]
    $region41: #{tpu_custom_call.1} parent=1 // pred_fallthru
      _
    // Predicated region
    $region42: #{tpu_custom_call.1} parent=1 // pred_check
      _
    $region43: #{tpu_custom_call.1} parent=1 // pred_check_branch
      %910 = sbr.rel (0) target = $region45
    $region44: #{tpu_custom_call.1} parent=1 // pred_region
      %911 = dma.done [#allocation5], 512
    $region45: #{tpu_custom_call.1} parent=1 // pred_fallthru
      _
    %912 = vsyncpa [#allocation4], 1
    %913 = vsyncpa [#allocation7], 1
    %914 = vsyncpa [#allocation5], 1

</llo_original>
